<compile_context>
chip_gen: v5e
topology: v5e:2x2
jax: 0.10.0
libtpu: 0.0.40
codegen_flags: <defaults>
</compile_context>

<pallas_src>
import functools

import jax
import jax.numpy as jnp
from jax.experimental import pallas as pl
from jax.experimental.pallas import tpu as pltpu

TEMPERATURE = 64.0 ** (-0.25)
EPS = 1e-12


def _renorm_scale(x_f32):
    """Per-row multiplier reproducing  (x*t) -> norm * dir  folded into one scale.

    scale = t * n / (n + eps)  with  n = t * ||x||, rewritten as
    scale = t * (1 - eps / (n + eps))  so the approx reciprocal's error only
    enters multiplied by eps (numerically irrelevant, zero-row safe).
    """
    n = TEMPERATURE * jnp.sqrt(jnp.sum(x_f32 * x_f32, axis=-1, keepdims=True))
    return TEMPERATURE * (1.0 - EPS * pl.reciprocal(n + EPS, approx=True))


def _contrastive_kernel(iq_ref, ik_ref, out_ref, *, mxu_dtype=None):
    """One grid step: G heads x (all N queries, TJ keys) -> one partial sum."""
    _, n_full, _ = iq_ref.shape
    tj = ik_ref.shape[1]
    mxu = mxu_dtype if mxu_dtype is not None else iq_ref.dtype

    # f32 copies only for the norm math; MXU operands stay in the input dtype.
    iq32 = iq_ref[...].astype(jnp.float32)                      # (G, N, C)
    ik32 = ik_ref[...].astype(jnp.float32)                      # (G, TJ, C)
    iq_m = (iq32 * _renorm_scale(iq32)).astype(mxu)             # (G, N, C)
    ik_m = (ik32 * _renorm_scale(ik32)).astype(mxu)             # (G, TJ, C)

    # Transposed logits: s[g, j, i] = <IK_j, IQ_i> = dot[g, i, j], so the
    # cross-entropy class reduction (over query i) is a last/lane-axis
    # reduction and no (N, N) transpose is ever materialized.
    s = jnp.einsum("gjc,gic->gji", ik_m, iq_m,
                   preferred_element_type=jnp.float32)          # (G, TJ, N)

    m = jnp.max(s, axis=-1, keepdims=True)                      # (G, TJ, 1)
    # NOTE: if bundle dumps show the EUP exp as the binding slot (small C on
    # v6e/v7x), exp could run in bf16 with an f32 sum; kept f32 for accuracy.
    lse = jnp.log(jnp.sum(jnp.exp(s - m), axis=-1, keepdims=True)) + m

    # Diagonal dot[g, j, j] for this key tile, from the SAME (mxu-dtype)
    # operands that feed the matmul -- consistent with its logsumexp term,
    # no eye mask / gather needed.
    if tj == n_full:
        iq_tile_m = iq_m
    else:
        j0 = pl.multiple_of(pl.program_id(1) * tj, 8)           # tj % 8 == 0 here
        iq_t32 = iq_ref[:, pl.ds(j0, tj), :].astype(jnp.float32)
        iq_tile_m = (iq_t32 * _renorm_scale(iq_t32)).astype(mxu)
    diag = jnp.sum(iq_tile_m.astype(jnp.float32) * ik_m.astype(jnp.float32),
                   axis=-1, keepdims=True)                      # (G, TJ, 1)

    partial = jnp.sum(lse - diag)                               # scalar
    out_ref[...] = jnp.full(out_ref.shape, partial, out_ref.dtype)


def _vmem_capacity_bytes():
    """Physical VMEM per core; falls back to 128 MiB (v5e/v6e) if unknown."""
    try:
        return int(pltpu.get_tpu_info().vmem_capacity_bytes)
    except Exception:
        return 128 << 20


def _choose_key_tile(N, target=256):
    """Key-row tile TJ: divides N, multiple of 8 (or equals N), <= target."""
    if N <= target:
        return N
    for tj in range(target, 7, -1):
        if N % tj == 0 and tj % 8 == 0:
            return tj
    return N   # no aligned divisor: fall back to a single full-N key tile


def _choose_group(BH, N, TJ, C, itemsize, budget_bytes):
    """Largest divisor-of-BH head group whose working set fits the budget,
    capped at BH//2 so the parallel grid has >= 2 blocks (v7x has 2 TCs)."""
    per_head = (
        2 * (N + TJ) * C * itemsize        # IQ + IK input blocks, double-buffered
        + (N + 3 * TJ) * C * 4             # f32 / mxu working copies
        + 3 * TJ * N * 4                   # logits s, (s - m), exp(s - m)
        + 8 * TJ * 4                       # max / lse / diag / scale rows
    )
    g = max(1, min(BH, budget_bytes // max(1, per_head)))
    if BH >= 2:
        g = max(1, min(g, BH // 2))
    while BH % g:                          # keep the grid exact (no tail block)
        g -= 1
    return g


def contrastive_loss(I, *, mxu_dtype=None):
    """I: array of shape (2, B, H, N, C). Returns scalar loss (float32)."""
    assert I.shape[0] == 2
    _, B, H, N, C = I.shape
    BH = B * H
    I2 = I.reshape(2, BH, N, C)            # contiguous collapse: no HBM copy

    # Per-generation sizing: v7x has 64 MiB VMEM/core, v5e/v6e have 128 MiB.
    if _vmem_capacity_bytes() <= (64 << 20):        # v7x
        vmem_limit, budget = 48 << 20, 12 << 20
    else:                                           # v5e / v6e
        vmem_limit, budget = 80 << 20, 20 << 20

    TJ = _choose_key_tile(N)
    num_jt = N // TJ
    G = _choose_group(BH, N, TJ, C, I2.dtype.itemsize, budget)
    num_blocks = BH // G

    cost = pl.CostEstimate(
        flops=2 * BH * N * N * C + 8 * BH * N * C,
        transcendentals=BH * N * N + 4 * BH * N,
        bytes_accessed=2 * BH * N * C * I2.dtype.itemsize
        + num_blocks * num_jt * 128 * 4,
    )

    partials = pl.pallas_call(
        functools.partial(_contrastive_kernel, mxu_dtype=mxu_dtype),
        out_shape=jax.ShapeDtypeStruct((num_blocks, num_jt, 1, 128), jnp.float32),
        grid_spec=pltpu.PrefetchScalarGridSpec(
            num_scalar_prefetch=0,
            grid=(num_blocks, num_jt),
            in_specs=[
                # IQ half: all N query rows of G heads (index 0 on the 2-dim).
                pl.BlockSpec((None, G, N, C), lambda i, j: (0, i, 0, 0)),
                # IK half: TJ key rows of the same G heads (index 1 on the 2-dim).
                pl.BlockSpec((None, G, TJ, C), lambda i, j: (1, i, j, 0)),
            ],
            out_specs=pl.BlockSpec((1, 1, 1, 128), lambda i, j: (i, j, 0, 0)),
        ),
        compiler_params=pltpu.CompilerParams(
            dimension_semantics=("parallel", "parallel"),
            vmem_limit_bytes=vmem_limit,
        ),
        cost_estimate=cost,
    )(I2, I2)

    # Final reduction / mean in plain JAX (cheap, keeps every grid axis parallel).
    return jnp.sum(partials[:, :, 0, 0]) / jnp.float32(BH * N)


def contrastive_loss_ref(I):
    """Pure-JAX reference matching the PyTorch forward."""
    IQ = I[0].astype(jnp.float32)
    IK = I[1].astype(jnp.float32)
    B, H, N, C = IQ.shape
    IQ = IQ * TEMPERATURE
    nq = jnp.linalg.norm(IQ, axis=-1, keepdims=True)
    IQ = nq * (IQ / (nq + EPS))
    IK = IK * TEMPERATURE
    nk = jnp.linalg.norm(IK, axis=-1, keepdims=True)
    IK = nk * (IK / (nk + EPS))
    dot = jnp.einsum("bhnc,bhmc->bhnm", IQ, IK).reshape(B * H, N, N)
    # cross_entropy: class dim = 1, target j along dim 2
    lse = jax.scipy.special.logsumexp(dot, axis=1)          # (BH, N)
    diag = jnp.diagonal(dot, axis1=1, axis2=2)              # (BH, N)
    return jnp.mean(lse - diag)


if __name__ == "__main__":
    B, H, N, C = 2, 4, 8, 32
    key = jax.random.PRNGKey(0)
    I = jax.random.normal(key, (2, B, H, N, C), dtype=jnp.float32)

    # f32 path: strict check against the PyTorch-equivalent reference.
    loss = jax.block_until_ready(contrastive_loss(I))
    ref = jax.block_until_ready(contrastive_loss_ref(I))
    assert jnp.isfinite(loss), "loss is not finite"
    assert jnp.allclose(loss, ref, rtol=1e-4, atol=1e-5), (loss, ref)

    # bf16 path: exercises the bf16-native MXU operands (looser tolerance,
    # inputs themselves are bf16-rounded).
    I_bf16 = I.astype(jnp.bfloat16)
    loss_bf = jax.block_until_ready(contrastive_loss(I_bf16))
    ref_bf = jax.block_until_ready(contrastive_loss_ref(I_bf16))
    assert jnp.isfinite(loss_bf), "bf16 loss is not finite"
    assert jnp.allclose(loss_bf, ref_bf, rtol=5e-2, atol=1e-2), (loss_bf, ref_bf)

    print("KERNEL_OK")
</pallas_src>

<mosaic_0001>
module attributes {stable_mosaic.version = 11 : i64} {
  func.func @_contrastive_kernel(%arg0: i32, %arg1: i32, %arg2: memref<1x4x8x32xf32, #tpu.memory_space<vmem>>, %arg3: memref<1x4x8x32xf32, #tpu.memory_space<vmem>>, %arg4: memref<1x1x1x128xf32, #tpu.memory_space<vmem>>) attributes {dimension_semantics = [#tpu.dimension_semantics<parallel>, #tpu.dimension_semantics<parallel>], iteration_bounds = array<i64: 2, 1>, scalar_prefetch = 0 : i64, scratch_operands = 0 : i64, tpu.core_type = #tpu.core_type<tc>, window_params = [{transform_indices = @transform_0, window_bounds = array<i64: 1, 4, 8, 32>}, {transform_indices = @transform_1, window_bounds = array<i64: 1, 4, 8, 32>}, {transform_indices = @transform_2, window_bounds = array<i64: 1, 1, 1, 128>}]} {
    %c0 = arith.constant 0 : index
    %c0_0 = arith.constant 0 : index
    %c0_1 = arith.constant 0 : index
    %c0_2 = arith.constant 0 : index
    %0 = vector.load %arg2[%c0, %c0_0, %c0_1, %c0_2] : memref<1x4x8x32xf32, #tpu.memory_space<vmem>>, vector<1x4x8x32xf32>
    %1 = vector.shape_cast %0 : vector<1x4x8x32xf32> to vector<4x8x32xf32>
    %c0_3 = arith.constant 0 : index
    %c0_4 = arith.constant 0 : index
    %c0_5 = arith.constant 0 : index
    %c0_6 = arith.constant 0 : index
    %2 = vector.load %arg3[%c0_3, %c0_4, %c0_5, %c0_6] : memref<1x4x8x32xf32, #tpu.memory_space<vmem>>, vector<1x4x8x32xf32>
    %3 = vector.shape_cast %2 : vector<1x4x8x32xf32> to vector<4x8x32xf32>
    %4 = arith.mulf %1, %1 : vector<4x8x32xf32>
    %cst = arith.constant dense<0.000000e+00> : vector<4x8xf32>
    %5 = vector.multi_reduction <add>, %4, %cst [2] : vector<4x8x32xf32> to vector<4x8xf32>
    %6 = vector.shape_cast %5 : vector<4x8xf32> to vector<4x8x1xf32>
    %7 = math.sqrt %6 : vector<4x8x1xf32>
    %cst_7 = arith.constant 0.353553385 : f32
    %8 = vector.broadcast %cst_7 : f32 to vector<4x8x1xf32>
    %9 = arith.mulf %8, %7 : vector<4x8x1xf32>
    %cst_8 = arith.constant 9.99999996E-13 : f32
    %10 = vector.broadcast %cst_8 : f32 to vector<4x8x1xf32>
    %11 = arith.addf %9, %10 : vector<4x8x1xf32>
    %12 = tpu.reciprocal %11 {approx = true} : vector<4x8x1xf32> -> vector<4x8x1xf32>
    %cst_9 = arith.constant 9.99999996E-13 : f32
    %13 = vector.broadcast %cst_9 : f32 to vector<4x8x1xf32>
    %14 = arith.mulf %13, %12 : vector<4x8x1xf32>
    %cst_10 = arith.constant 1.000000e+00 : f32
    %15 = vector.broadcast %cst_10 : f32 to vector<4x8x1xf32>
    %16 = arith.subf %15, %14 : vector<4x8x1xf32>
    %cst_11 = arith.constant 0.353553385 : f32
    %17 = vector.broadcast %cst_11 : f32 to vector<4x8x1xf32>
    %18 = arith.mulf %17, %16 : vector<4x8x1xf32>
    %19 = vector.broadcast %18 : vector<4x8x1xf32> to vector<4x8x32xf32>
    %20 = arith.mulf %1, %19 : vector<4x8x32xf32>
    %21 = arith.mulf %3, %3 : vector<4x8x32xf32>
    %cst_12 = arith.constant dense<0.000000e+00> : vector<4x8xf32>
    %22 = vector.multi_reduction <add>, %21, %cst_12 [2] : vector<4x8x32xf32> to vector<4x8xf32>
    %23 = vector.shape_cast %22 : vector<4x8xf32> to vector<4x8x1xf32>
    %24 = math.sqrt %23 : vector<4x8x1xf32>
    %cst_13 = arith.constant 0.353553385 : f32
    %25 = vector.broadcast %cst_13 : f32 to vector<4x8x1xf32>
    %26 = arith.mulf %25, %24 : vector<4x8x1xf32>
    %cst_14 = arith.constant 9.99999996E-13 : f32
    %27 = vector.broadcast %cst_14 : f32 to vector<4x8x1xf32>
    %28 = arith.addf %26, %27 : vector<4x8x1xf32>
    %29 = tpu.reciprocal %28 {approx = true} : vector<4x8x1xf32> -> vector<4x8x1xf32>
    %cst_15 = arith.constant 9.99999996E-13 : f32
    %30 = vector.broadcast %cst_15 : f32 to vector<4x8x1xf32>
    %31 = arith.mulf %30, %29 : vector<4x8x1xf32>
    %cst_16 = arith.constant 1.000000e+00 : f32
    %32 = vector.broadcast %cst_16 : f32 to vector<4x8x1xf32>
    %33 = arith.subf %32, %31 : vector<4x8x1xf32>
    %cst_17 = arith.constant 0.353553385 : f32
    %34 = vector.broadcast %cst_17 : f32 to vector<4x8x1xf32>
    %35 = arith.mulf %34, %33 : vector<4x8x1xf32>
    %36 = vector.broadcast %35 : vector<4x8x1xf32> to vector<4x8x32xf32>
    %37 = arith.mulf %3, %36 : vector<4x8x32xf32>
    "tpu.trace_start"() <{level = 10 : i32, message = "gjc,gic->gji"}> : () -> ()
    %cst_18 = arith.constant dense<0.000000e+00> : vector<4x8x8xf32>
    %38 = tpu.matmul %37, %20, %cst_18 {dimension_numbers = #tpu.dot_dimension_numbers<[2], [2], [1], [1], [0, 0, 0, 1, 1, 1], [0], [0]>} : vector<4x8x32xf32>, vector<4x8x32xf32>, vector<4x8x8xf32> -> vector<4x8x8xf32>
    "tpu.trace_stop"() : () -> ()
    %cst_19 = arith.constant dense<0xFF800000> : vector<4x8xf32>
    %39 = vector.multi_reduction <maximumf>, %38, %cst_19 [2] : vector<4x8x8xf32> to vector<4x8xf32>
    %40 = vector.shape_cast %39 : vector<4x8xf32> to vector<4x8x1xf32>
    %41 = vector.broadcast %40 : vector<4x8x1xf32> to vector<4x8x8xf32>
    %42 = arith.subf %38, %41 : vector<4x8x8xf32>
    %43 = math.exp %42 : vector<4x8x8xf32>
    %cst_20 = arith.constant dense<0.000000e+00> : vector<4x8xf32>
    %44 = vector.multi_reduction <add>, %43, %cst_20 [2] : vector<4x8x8xf32> to vector<4x8xf32>
    %45 = vector.shape_cast %44 : vector<4x8xf32> to vector<4x8x1xf32>
    %46 = math.log %45 : vector<4x8x1xf32>
    %47 = arith.addf %46, %40 : vector<4x8x1xf32>
    %48 = arith.mulf %20, %37 : vector<4x8x32xf32>
    %cst_21 = arith.constant dense<0.000000e+00> : vector<4x8xf32>
    %49 = vector.multi_reduction <add>, %48, %cst_21 [2] : vector<4x8x32xf32> to vector<4x8xf32>
    %50 = vector.shape_cast %49 : vector<4x8xf32> to vector<4x8x1xf32>
    %51 = arith.subf %47, %50 : vector<4x8x1xf32>
    %52 = vector.shape_cast %51 : vector<4x8x1xf32> to vector<1x4x8x1xf32>
    %cst_22 = arith.constant dense<0.000000e+00> : vector<1xf32>
    %53 = vector.multi_reduction <add>, %52, %cst_22 [1, 2, 3] : vector<1x4x8x1xf32> to vector<1xf32>
    %54 = vector.shape_cast %53 : vector<1xf32> to vector<1x1x1x1xf32>
    %55 = vector.extract %54[0, 0, 0, 0] : f32 from vector<1x1x1x1xf32>
    %56 = vector.broadcast %55 : f32 to vector<1x1x1x128xf32>
    %c0_23 = arith.constant 0 : index
    %c0_24 = arith.constant 0 : index
    %c0_25 = arith.constant 0 : index
    %c0_26 = arith.constant 0 : index
    %57 = vector.load %arg4[%c0_23, %c0_24, %c0_25, %c0_26] : memref<1x1x1x128xf32, #tpu.memory_space<vmem>>, vector<1x1x1x128xf32>
    tpu.vector_store %arg4[%c0_23, %c0_24, %c0_25, %c0_26], %56 {strides = array<i32>} : memref<1x1x1x128xf32, #tpu.memory_space<vmem>>, vector<1x1x1x128xf32>,
    return
  }
  func.func @transform_0(%arg0: i32, %arg1: i32) -> (i32, i32, i32, i32) {
    %c0_i32 = arith.constant 0 : i32
    %c0_i32_0 = arith.constant 0 : i32
    %c0_i32_1 = arith.constant 0 : i32
    %c0_i32_2 = arith.constant 0 : i32
    return %c0_i32, %arg0, %c0_i32_0, %c0_i32_1 : i32, i32, i32, i32
  }
  func.func @transform_1(%arg0: i32, %arg1: i32) -> (i32, i32, i32, i32) {
    %c1_i32 = arith.constant 1 : i32
    %c0_i32 = arith.constant 0 : i32
    %c0_i32_0 = arith.constant 0 : i32
    return %c1_i32, %arg0, %arg1, %c0_i32 : i32, i32, i32, i32
  }
  func.func @transform_2(%arg0: i32, %arg1: i32) -> (i32, i32, i32, i32) {
    %c0_i32 = arith.constant 0 : i32
    %c0_i32_0 = arith.constant 0 : i32
    %c0_i32_1 = arith.constant 0 : i32
    return %arg0, %arg1, %c0_i32, %c0_i32_0 : i32, i32, i32, i32
  }
}

</mosaic_0001>

<llo_original>
// kernel: tpu_custom_call.1
$region0: #{tpu_custom_call.1}
  #allocation0 [shape = 'u32[]', space=smem, size = 0x4, offset = 0x4, fixed_abs, tag = 'smem constant byte address 0x4 - core index']
  #allocation1 [shape = 'u32[72,128]{1,0:T(1,128)}', space=vmem, size = 0x9000, scoped, tag = 'internal scratch']
  %s0 = inlined_call_operand.hbm [shape: f32[2,8,8,32], index: 0, kind: input, shape index: {}]
  %s1 = inlined_call_operand.hbm [shape: f32[2,8,8,32], index: 1, kind: input, shape index: {}]
  %s2 = inlined_call_operand.hbm [shape: f32[2,1,1,128], index: 2, kind: output, shape index: {}]
  %s3 = sld [smem:[#allocation0]]
  $region49: #{tpu_custom_call.1} parent=0
    _
  %s5 = ssub.s32 1, %s3
  %s6 = scalar_select 0, %s5, %s3
  $region1: #{tpu_custom_call.1} parent=0
    #allocation2 [shape = 'u8[32768]{0}', space=vmem, size = 0x8000, scoped, tag = 'input window, operand 0']
    #allocation3 [shape = 's32[2]{0}', space=sflag, size = 0x8, scoped, tag = 'scoped memory for tpu_custom_call.1']
    #allocation4 [shape = 's32[2]{0}', space=sflag, size = 0x8, scoped, tag = 'scoped memory for tpu_custom_call.1']
    #allocation5 [shape = 'u8[32768]{0}', space=vmem, size = 0x8000, scoped, tag = 'input window, operand 1']
    #allocation6 [shape = 's32[2]{0}', space=sflag, size = 0x8, scoped, tag = 'scoped memory for tpu_custom_call.1']
    #allocation7 [shape = 'u8[1024]{0}', space=vmem, size = 0x400, scoped, tag = 'output window, operand 0']
    %7 = vsyncpa [#allocation3], 0
    %s8 = scalar_lea.sflag [#allocation3], 1
    %9 = vsyncpa %s8, 0
    %10 = vsyncpa [#allocation6], 0
    %s11 = scalar_lea.sflag [#allocation6], 1
    %12 = vsyncpa %s11, 0
    %13 = vsyncpa [#allocation4], 0
    %s14 = scalar_lea.sflag [#allocation4], 1
    %15 = vsyncpa %s14, 0
    loop: start=0, step=1, limit=4
    $region2: #{tpu_custom_call.1} parent=1 // loop_pre_header
      _
    $region3: #{tpu_custom_call.1} parent=1 // loop_header
      %s17 = sphi 0, %s21
      %p18 = scmp.ge.s32.totalorder %s17, 4
      %s24 = sphi 0, %s36
      %s25 = sphi 0, %s32
      %s26 = sphi 0, %s24
      %s27 = sphi 0, %s25
      %s28 = sphi 0, %s26
      %s29 = sphi 0, %s27
      %s39 = sphi 0, %s41
      %s42 = sphi 0, %s39
      %s43 = sphi 0, %s42
      %s59 = sphi 0, %s43
      %s67 = sphi 0, %s69
      %s70 = sphi 0, %s67
      %s71 = sphi 0, %s70
      %s87 = sphi 0, %s71
      %s95 = sphi 0, %s97
      %s98 = sphi 0, %s95
      %s99 = sphi 0, %s98
      %s115 = sphi 0, %s99
    $region4: #{tpu_custom_call.1} parent=1 // loop_header_branch
      %20 = sbr.rel (%p18) target = $region8
    $region5: #{tpu_custom_call.1} parent=1 // loop_body
      %s22 = ssub.s32 %s17, 1
      %s23 = ssub.s32 %s17, 2
      %s30 = sadd.s32 1, %s25
      %p31 = scmp.ge.s32.totalorder %s30, 1
      %s32 = scalar_select %p31, 0, %s30
      %s33 = sadd.s32 1, %s24
      %s34 = scalar_select %p31, %s33, %s24
      %p35 = scmp.ge.s32.totalorder %s34, 2
      %s36 = scalar_select %p35, 0, %s34
      %s37 = ssub.s32 %s24, %s36
      %p38 = scmp.eq.s32.totalorder %s37, 0
      %s40 = sadd.s32 %s39, 1
      %s41 = scalar_select %p38, %s39, %s40
      %p44 = pneg %p38
      %p45 = scmp.eq.s32.totalorder %s17, 1
      %p46 = por %p44, %p45
      %p47 = scmp.ne.s32.totalorder %s39, %s42
      %p48 = scmp.eq.s32.totalorder %s17, 0
      %p49 = por %p47, %p48
      %p50 = scmp.ne.s32.totalorder %s39, %s42
      %p51 = scmp.eq.s32.totalorder %s22, 1
      %p52 = por %p50, %p51
      %p53 = scmp.ne.s32.totalorder %s42, %s43
      %p54 = scmp.eq.s32.totalorder %s22, 0
      %p55 = por %p53, %p54
      %p56 = scmp.ne.s32.totalorder %s42, %s43
      %p57 = scmp.eq.s32.totalorder %s23, 1
      %p58 = por %p56, %p57
      %p60 = scmp.ne.s32.totalorder %s43, %s59
      %p61 = scmp.eq.s32.totalorder %s23, 0
      %p62 = por %p60, %p61
      %s63 = ssub.s32 %s24, %s36
      %s64 = ssub.s32 %s25, %s32
      %s65 = sor.u32 %s63, %s64
      %p66 = scmp.eq.s32.totalorder %s65, 0
      %s68 = sadd.s32 %s67, 1
      %s69 = scalar_select %p66, %s67, %s68
      %p72 = pneg %p66
      %p73 = scmp.eq.s32.totalorder %s17, 1
      %p74 = por %p72, %p73
      %p75 = scmp.ne.s32.totalorder %s67, %s70
      %p76 = scmp.eq.s32.totalorder %s17, 0
      %p77 = por %p75, %p76
      %p78 = scmp.ne.s32.totalorder %s67, %s70
      %p79 = scmp.eq.s32.totalorder %s22, 1
      %p80 = por %p78, %p79
      %p81 = scmp.ne.s32.totalorder %s70, %s71
      %p82 = scmp.eq.s32.totalorder %s22, 0
      %p83 = por %p81, %p82
      %p84 = scmp.ne.s32.totalorder %s70, %s71
      %p85 = scmp.eq.s32.totalorder %s23, 1
      %p86 = por %p84, %p85
      %p88 = scmp.ne.s32.totalorder %s71, %s87
      %p89 = scmp.eq.s32.totalorder %s23, 0
      %p90 = por %p88, %p89
      %s91 = ssub.s32 %s24, %s36
      %s92 = ssub.s32 %s25, %s32
      %s93 = sor.u32 %s91, %s92
      %p94 = scmp.eq.s32.totalorder %s93, 0
      %s96 = sadd.s32 %s95, 1
      %s97 = scalar_select %p94, %s95, %s96
      %p100 = pneg %p94
      %p101 = scmp.eq.s32.totalorder %s17, 1
      %p102 = por %p100, %p101
      %p103 = scmp.ne.s32.totalorder %s95, %s98
      %p104 = scmp.eq.s32.totalorder %s17, 0
      %p105 = por %p103, %p104
      %p106 = scmp.ne.s32.totalorder %s95, %s98
      %p107 = scmp.eq.s32.totalorder %s22, 1
      %p108 = por %p106, %p107
      %p109 = scmp.ne.s32.totalorder %s98, %s99
      %p110 = scmp.eq.s32.totalorder %s22, 0
      %p111 = por %p109, %p110
      %p112 = scmp.ne.s32.totalorder %s98, %s99
      %p113 = scmp.eq.s32.totalorder %s23, 1
      %p114 = por %p112, %p113
      %p116 = scmp.ne.s32.totalorder %s99, %s115
      %p117 = scmp.eq.s32.totalorder %s23, 0
      %p118 = por %p116, %p117
      %p119 = scmp.le.s32.totalorder 1, %s17
      %p120 = scmp.lt.s32.totalorder %s17, 3
      %p121 = pnand %p119, %p120
      %p122 = pneg %p121
      // Predicated region
      $region9: #{tpu_custom_call.1} parent=5 // pred_check
        _
      $region10: #{tpu_custom_call.1} parent=5 // pred_check_branch
        %124 = sbr.rel (%p121) target = $region12
      $region11: #{tpu_custom_call.1} parent=5 // pred_region
        %s125 = ssub.s32 %s17, 1
      $region12: #{tpu_custom_call.1} parent=5 // pred_fallthru
        _
      %p126 = scmp.lt.s32.totalorder %s17, 2
      // Predicated region
      $region13: #{tpu_custom_call.1} parent=5 // pred_check
        %p127 = pneg %p126
      $region14: #{tpu_custom_call.1} parent=5 // pred_check_branch
        %129 = sbr.rel (%p127) target = $region16
      $region15: #{tpu_custom_call.1} parent=5 // pred_region
        // Predicated region
        $region17: #{tpu_custom_call.1} parent=15 // pred_check
          %p130 = pneg %p49
        $region18: #{tpu_custom_call.1} parent=15 // pred_check_branch
          %132 = sbr.rel (%p130) target = $region20
        $region19: #{tpu_custom_call.1} parent=15 // pred_region
          %s133 = sand.u32 %s39, 1
          %s134 = scalar_lea.sflag [#allocation3], %s133
          %s135 = sand.u32 %s39, 1
          %s136 = smul.addr %s135, 32
          %s137 = scalar_lea.vmem [#allocation2], %s136
          %s138 = smul.u32 4, %s24
          %140 = vsyncadd %s134, 0
          %s141 = smul.addr %s138, 8
          %s142 = scalar_lea.hbm %s0, %s141
          %s143 = sshll.u32 %s142, 4
          %s144 = int_to_ptr.hbm [resolvable:$true] %s143
          %s145 = sshll.u32 %s137, 4
          %s146 = int_to_ptr.vmem [resolvable:$true] %s145
          %151 = dma.hbm_to_vmem [thread:$0]  %s144, 512, %s146, %s134, 128, 128, 8
        $region20: #{tpu_custom_call.1} parent=15 // pred_fallthru
          _
        // Predicated region
        $region21: #{tpu_custom_call.1} parent=15 // pred_check
          %p152 = pneg %p77
        $region22: #{tpu_custom_call.1} parent=15 // pred_check_branch
          %154 = sbr.rel (%p152) target = $region24
        $region23: #{tpu_custom_call.1} parent=15 // pred_region
          %s155 = sand.u32 %s67, 1
          %s156 = scalar_lea.sflag [#allocation6], %s155
          %s157 = sand.u32 %s67, 1
          %s158 = smul.addr %s157, 32
          %s159 = scalar_lea.vmem [#allocation5], %s158
          %s160 = smul.u32 4, %s24
          %162 = vsyncadd %s156, 0
          %s163 = sadd.s32 %s25, %s160
          %s164 = sadd.s32 %s163, 8
          %s165 = smul.addr %s164, 8
          %s166 = scalar_lea.hbm %s1, %s165
          %s167 = sshll.u32 %s166, 4
          %s168 = int_to_ptr.hbm [resolvable:$true] %s167
          %s169 = sshll.u32 %s159, 4
          %s170 = int_to_ptr.vmem [resolvable:$true] %s169
          %175 = dma.hbm_to_vmem [thread:$0]  %s168, 512, %s170, %s156, 128, 128, 8
        $region24: #{tpu_custom_call.1} parent=15 // pred_fallthru
          _
      $region16: #{tpu_custom_call.1} parent=5 // pred_fallthru
        _
      %p176 = scmp.le.s32.totalorder 1, %s17
      %p177 = scmp.lt.s32.totalorder %s17, 3
      %p178 = pnand %p176, %p177
      %p179 = pneg %p178
      // Predicated region
      $region25: #{tpu_custom_call.1} parent=5 // pred_check
        _
      $region26: #{tpu_custom_call.1} parent=5 // pred_check_branch
        %181 = sbr.rel (%p178) target = $region28
      $region27: #{tpu_custom_call.1} parent=5 // pred_region
        %s182 = ssub.s32 %s17, 1
        %s183 = sand.u32 %s42, 1
        %s184 = scalar_lea.sflag [#allocation3], %s183
        %s185 = sand.u32 %s42, 1
        %s186 = smul.addr %s185, 32
        %s187 = scalar_lea.vmem [#allocation2], %s186
        // Predicated region
        $region29: #{tpu_custom_call.1} parent=27 // pred_check
          %p188 = pneg %p55
        $region30: #{tpu_custom_call.1} parent=27 // pred_check_branch
          %190 = sbr.rel (%p188) target = $region32
        $region31: #{tpu_custom_call.1} parent=27 // pred_region
          %192 = dma.done %s184, 512
        $region32: #{tpu_custom_call.1} parent=27 // pred_fallthru
          _
        %s193 = sand.u32 %s70, 1
        %s194 = scalar_lea.sflag [#allocation6], %s193
        %s195 = sand.u32 %s70, 1
        %s196 = smul.addr %s195, 32
        %s197 = scalar_lea.vmem [#allocation5], %s196
        // Predicated region
        $region33: #{tpu_custom_call.1} parent=27 // pred_check
          %p198 = pneg %p83
        $region34: #{tpu_custom_call.1} parent=27 // pred_check_branch
          %200 = sbr.rel (%p198) target = $region36
        $region35: #{tpu_custom_call.1} parent=27 // pred_region
          %202 = dma.done %s194, 512
        $region36: #{tpu_custom_call.1} parent=27 // pred_fallthru
          _
        %s203 = sand.u32 %s42, 1
        %s204 = scalar_lea.sflag [#allocation3], %s203
        %s205 = sand.u32 %s42, 1
        %s206 = smul.addr %s205, 32
        %s207 = scalar_lea.vmem [#allocation2], %s206
        %p208 = pneg %p55
        %p209 = pneg %p52
        %s210 = sand.u32 %s70, 1
        %s211 = scalar_lea.sflag [#allocation6], %s210
        %s212 = sand.u32 %s70, 1
        %s213 = smul.addr %s212, 32
        %s214 = scalar_lea.vmem [#allocation5], %s213
        %p215 = pneg %p83
        %p216 = pneg %p80
        %p217 = pneg %p111
        %p218 = pneg %p108
        %s219 = sand.u32 %s98, 1
        %s220 = scalar_lea.sflag [#allocation4], %s219
        %s221 = sand.u32 %s98, 1
        %s222 = scalar_lea.vmem [#allocation7], %s221
        %s223 = smul.u32 4, %s26
        %s224 = smul.u32 4, %s26
        %v225 = vld [vmem:[%s187] sm:$0xff]
        %v226 = vld [vmem:[%s187 + $0x8] sm:$0xff]
        %v227 = vld [vmem:[%s187 + $0x10] sm:$0xff]
        %v228 = vld [vmem:[%s187 + $0x18] sm:$0xff]
        %v229 = vld [vmem:[%s197] sm:$0xff]
        %v230 = vld [vmem:[%s197 + $0x8] sm:$0xff]
        %v231 = vld [vmem:[%s197 + $0x10] sm:$0xff]
        %v232 = vld [vmem:[%s197 + $0x18] sm:$0xff]
        %v233 = vmul.f32 %v225, %v225
        %v234 = vmul.f32 %v226, %v226
        %v235 = vmul.f32 %v227, %v227
        %v236 = vmul.f32 %v228, %v228
        %vm237 = vcmask 261120
        %v238 = vsel %vm237, %v233, 0.0
        %239 = vadd.xlane.f32.xlu0 %v238
        %v240 = vpop.xlane.xlu0 %239
        %v241 = vsel %vm237, %v234, 0.0
        %242 = vadd.xlane.f32.xlu0 %v241
        %v243 = vpop.xlane.xlu0 %242
        %v244 = vsel %vm237, %v235, 0.0
        %245 = vadd.xlane.f32.xlu0 %v244
        %v246 = vpop.xlane.xlu0 %245
        %v247 = vsel %vm237, %v236, 0.0
        %248 = vadd.xlane.f32.xlu0 %v247
        %v249 = vpop.xlane.xlu0 %248
        %v250 = vrsqrt.pop %v240
        %v251 = vmul.f32 %v250, %v240
        %v252 = vmul.f32 %v251, %v250
        %v253 = vmul.f32 0.5, %v252
        %v254 = vsub.f32 1.5, %v253
        %v255 = vmul.f32 %v250, %v254
        %v256 = vmul.f32 %v240, %v255
        %vm257 = vcmp.eq.f32.partialorder %v240, inf
        %v258 = vsel %vm257, %v240, %v256
        %vm259 = vcmp.eq.f32.partialorder %v240, 0.0
        %v260 = vand.u32 %v240, 2147483648
        %v261 = vsel %vm259, %v260, %v258
        %v262 = vrsqrt.pop %v243
        %v263 = vmul.f32 %v262, %v243
        %v264 = vmul.f32 %v263, %v262
        %v265 = vmul.f32 0.5, %v264
        %v266 = vsub.f32 1.5, %v265
        %v267 = vmul.f32 %v262, %v266
        %v268 = vmul.f32 %v243, %v267
        %vm269 = vcmp.eq.f32.partialorder %v243, inf
        %v270 = vsel %vm269, %v243, %v268
        %vm271 = vcmp.eq.f32.partialorder %v243, 0.0
        %v272 = vand.u32 %v243, 2147483648
        %v273 = vsel %vm271, %v272, %v270
        %v274 = vrsqrt.pop %v246
        %v275 = vmul.f32 %v274, %v246
        %v276 = vmul.f32 %v275, %v274
        %v277 = vmul.f32 0.5, %v276
        %v278 = vsub.f32 1.5, %v277
        %v279 = vmul.f32 %v274, %v278
        %v280 = vmul.f32 %v246, %v279
        %vm281 = vcmp.eq.f32.partialorder %v246, inf
        %v282 = vsel %vm281, %v246, %v280
        %vm283 = vcmp.eq.f32.partialorder %v246, 0.0
        %v284 = vand.u32 %v246, 2147483648
        %v285 = vsel %vm283, %v284, %v282
        %v286 = vrsqrt.pop %v249
        %v287 = vmul.f32 %v286, %v249
        %v288 = vmul.f32 %v287, %v286
        %v289 = vmul.f32 0.5, %v288
        %v290 = vsub.f32 1.5, %v289
        %v291 = vmul.f32 %v286, %v290
        %v292 = vmul.f32 %v249, %v291
        %vm293 = vcmp.eq.f32.partialorder %v249, inf
        %v294 = vsel %vm293, %v249, %v292
        %vm295 = vcmp.eq.f32.partialorder %v249, 0.0
        %v296 = vand.u32 %v249, 2147483648
        %v297 = vsel %vm295, %v296, %v294
        %v298 = vmul.f32 %v261, 0.35355338
        %v299 = vmul.f32 %v273, 0.35355338
        %v300 = vmul.f32 %v285, 0.35355338
        %v301 = vmul.f32 %v297, 0.35355338
        %v302 = vadd.f32 %v298, 1e-12
        %v303 = vadd.f32 %v299, 1e-12
        %v304 = vadd.f32 %v300, 1e-12
        %v305 = vadd.f32 %v301, 1e-12
        %v306 = vrcp.pop %v302
        %v307 = vrcp.pop %v303
        %v308 = vrcp.pop %v304
        %v309 = vrcp.pop %v305
        %v310 = vmul.f32 %v306, 1e-12
        %v311 = vmul.f32 %v307, 1e-12
        %v312 = vmul.f32 %v308, 1e-12
        %v313 = vmul.f32 %v309, 1e-12
        %v314 = vsub.f32 1.0, %v310
        %v315 = vsub.f32 1.0, %v311
        %v316 = vsub.f32 1.0, %v312
        %v317 = vsub.f32 1.0, %v313
        %v318 = vmul.f32 %v314, 0.35355338
        %v319 = vmul.f32 %v315, 0.35355338
        %v320 = vmul.f32 %v316, 0.35355338
        %v321 = vmul.f32 %v317, 0.35355338
        %v322 = vmul.f32 %v225, %v318
        %v323 = vmul.f32 %v226, %v319
        %v324 = vmul.f32 %v227, %v320
        %v325 = vmul.f32 %v228, %v321
        %v326 = vmul.f32 %v229, %v229
        %v327 = vmul.f32 %v230, %v230
        %v328 = vmul.f32 %v231, %v231
        %v329 = vmul.f32 %v232, %v232
        %v330 = vsel %vm237, %v326, 0.0
        %331 = vadd.xlane.f32.xlu0 %v330
        %v332 = vpop.xlane.xlu0 %331
        %v333 = vsel %vm237, %v327, 0.0
        %334 = vadd.xlane.f32.xlu0 %v333
        %v335 = vpop.xlane.xlu0 %334
        %v336 = vsel %vm237, %v328, 0.0
        %337 = vadd.xlane.f32.xlu0 %v336
        %v338 = vpop.xlane.xlu0 %337
        %v339 = vsel %vm237, %v329, 0.0
        %340 = vadd.xlane.f32.xlu0 %v339
        %v341 = vpop.xlane.xlu0 %340
        %v342 = vrsqrt.pop %v332
        %v343 = vmul.f32 %v342, %v332
        %v344 = vmul.f32 %v343, %v342
        %v345 = vmul.f32 0.5, %v344
        %v346 = vsub.f32 1.5, %v345
        %v347 = vmul.f32 %v342, %v346
        %v348 = vmul.f32 %v332, %v347
        %vm349 = vcmp.eq.f32.partialorder %v332, inf
        %v350 = vsel %vm349, %v332, %v348
        %vm351 = vcmp.eq.f32.partialorder %v332, 0.0
        %v352 = vand.u32 %v332, 2147483648
        %v353 = vsel %vm351, %v352, %v350
        %v354 = vrsqrt.pop %v335
        %v355 = vmul.f32 %v354, %v335
        %v356 = vmul.f32 %v355, %v354
        %v357 = vmul.f32 0.5, %v356
        %v358 = vsub.f32 1.5, %v357
        %v359 = vmul.f32 %v354, %v358
        %v360 = vmul.f32 %v335, %v359
        %vm361 = vcmp.eq.f32.partialorder %v335, inf
        %v362 = vsel %vm361, %v335, %v360
        %vm363 = vcmp.eq.f32.partialorder %v335, 0.0
        %v364 = vand.u32 %v335, 2147483648
        %v365 = vsel %vm363, %v364, %v362
        %v366 = vrsqrt.pop %v338
        %v367 = vmul.f32 %v366, %v338
        %v368 = vmul.f32 %v367, %v366
        %v369 = vmul.f32 0.5, %v368
        %v370 = vsub.f32 1.5, %v369
        %v371 = vmul.f32 %v366, %v370
        %v372 = vmul.f32 %v338, %v371
        %vm373 = vcmp.eq.f32.partialorder %v338, inf
        %v374 = vsel %vm373, %v338, %v372
        %vm375 = vcmp.eq.f32.partialorder %v338, 0.0
        %v376 = vand.u32 %v338, 2147483648
        %v377 = vsel %vm375, %v376, %v374
        %v378 = vrsqrt.pop %v341
        %v379 = vmul.f32 %v378, %v341
        %v380 = vmul.f32 %v379, %v378
        %v381 = vmul.f32 0.5, %v380
        %v382 = vsub.f32 1.5, %v381
        %v383 = vmul.f32 %v378, %v382
        %v384 = vmul.f32 %v341, %v383
        %vm385 = vcmp.eq.f32.partialorder %v341, inf
        %v386 = vsel %vm385, %v341, %v384
        %vm387 = vcmp.eq.f32.partialorder %v341, 0.0
        %v388 = vand.u32 %v341, 2147483648
        %v389 = vsel %vm387, %v388, %v386
        %v390 = vmul.f32 %v353, 0.35355338
        %v391 = vmul.f32 %v365, 0.35355338
        %v392 = vmul.f32 %v377, 0.35355338
        %v393 = vmul.f32 %v389, 0.35355338
        %v394 = vadd.f32 %v390, 1e-12
        %v395 = vadd.f32 %v391, 1e-12
        %v396 = vadd.f32 %v392, 1e-12
        %v397 = vadd.f32 %v393, 1e-12
        %v398 = vrcp.pop %v394
        %v399 = vrcp.pop %v395
        %v400 = vrcp.pop %v396
        %v401 = vrcp.pop %v397
        %v402 = vmul.f32 %v398, 1e-12
        %v403 = vmul.f32 %v399, 1e-12
        %v404 = vmul.f32 %v400, 1e-12
        %v405 = vmul.f32 %v401, 1e-12
        %v406 = vsub.f32 1.0, %v402
        %v407 = vsub.f32 1.0, %v403
        %v408 = vsub.f32 1.0, %v404
        %v409 = vsub.f32 1.0, %v405
        %v410 = vmul.f32 %v406, 0.35355338
        %v411 = vmul.f32 %v407, 0.35355338
        %v412 = vmul.f32 %v408, 0.35355338
        %v413 = vmul.f32 %v409, 0.35355338
        %v414 = vmul.f32 %v229, %v410
        %v415 = vmul.f32 %v230, %v411
        %v416 = vmul.f32 %v231, %v412
        %v417 = vmul.f32 %v232, %v413
        %v419 = vsel %vm237, %v414, 0
        %v422 = vsel %vm237, %v322, 0
        %424 = vmatpush.xpose.msra.mxu0 0.0
        %425 = vmatpush.xpose.msra.mxu0 0.0
        %426 = vmatpush.xpose.msra.mxu0 0.0
        %427 = vmatpush.xpose.msra.mxu0 0.0
        %428 = vmatpush.xpose.msra.mxu0 0.0
        %429 = vmatpush.xpose.msra.mxu0 0.0
        %430 = vmatpush.xpose.msra.mxu0 0.0
        %431 = vmatpush.xpose.msra.mxu0 0.0
        %432 = vmatpush.xpose.msra.mxu0 0.0
        %433 = vmatpush.xpose.msra.mxu0 0.0
        %434 = vmatpush.xpose.msra.mxu0 0.0
        %435 = vmatpush.xpose.msra.mxu0 0.0
        %436 = vmatpush.xpose.msra.mxu0 0.0
        %437 = vmatpush.xpose.msra.mxu0 0.0
        %438 = vmatpush.xpose.msra.mxu0 0.0
        %439 = vmatpush.xpose.msra.mxu0 %v422
        %440 = vmatmul.f32.gmra.mxu0 %v419
        %v441 = vpop.f32.mrf.mxu0
        %v442 = vadd.f32 0.0, %v441
        %443 = vdwg.mxu0
        %v445 = vsel %vm237, %v415, 0
        %v448 = vsel %vm237, %v323, 0
        %450 = vmatpush.xpose.msra.mxu0 0.0
        %451 = vmatpush.xpose.msra.mxu0 0.0
        %452 = vmatpush.xpose.msra.mxu0 0.0
        %453 = vmatpush.xpose.msra.mxu0 0.0
        %454 = vmatpush.xpose.msra.mxu0 0.0
        %455 = vmatpush.xpose.msra.mxu0 0.0
        %456 = vmatpush.xpose.msra.mxu0 0.0
        %457 = vmatpush.xpose.msra.mxu0 0.0
        %458 = vmatpush.xpose.msra.mxu0 0.0
        %459 = vmatpush.xpose.msra.mxu0 0.0
        %460 = vmatpush.xpose.msra.mxu0 0.0
        %461 = vmatpush.xpose.msra.mxu0 0.0
        %462 = vmatpush.xpose.msra.mxu0 0.0
        %463 = vmatpush.xpose.msra.mxu0 0.0
        %464 = vmatpush.xpose.msra.mxu0 0.0
        %465 = vmatpush.xpose.msra.mxu0 %v448
        %466 = vmatmul.f32.gmra.mxu0 %v445
        %v467 = vpop.f32.mrf.mxu0
        %v468 = vadd.f32 0.0, %v467
        %469 = vdwg.mxu0
        %v471 = vsel %vm237, %v416, 0
        %v474 = vsel %vm237, %v324, 0
        %476 = vmatpush.xpose.msra.mxu0 0.0
        %477 = vmatpush.xpose.msra.mxu0 0.0
        %478 = vmatpush.xpose.msra.mxu0 0.0
        %479 = vmatpush.xpose.msra.mxu0 0.0
        %480 = vmatpush.xpose.msra.mxu0 0.0
        %481 = vmatpush.xpose.msra.mxu0 0.0
        %482 = vmatpush.xpose.msra.mxu0 0.0
        %483 = vmatpush.xpose.msra.mxu0 0.0
        %484 = vmatpush.xpose.msra.mxu0 0.0
        %485 = vmatpush.xpose.msra.mxu0 0.0
        %486 = vmatpush.xpose.msra.mxu0 0.0
        %487 = vmatpush.xpose.msra.mxu0 0.0
        %488 = vmatpush.xpose.msra.mxu0 0.0
        %489 = vmatpush.xpose.msra.mxu0 0.0
        %490 = vmatpush.xpose.msra.mxu0 0.0
        %491 = vmatpush.xpose.msra.mxu0 %v474
        %492 = vmatmul.f32.gmra.mxu0 %v471
        %v493 = vpop.f32.mrf.mxu0
        %v494 = vadd.f32 0.0, %v493
        %495 = vdwg.mxu0
        %v497 = vsel %vm237, %v417, 0
        %v500 = vsel %vm237, %v325, 0
        %502 = vmatpush.xpose.msra.mxu0 0.0
        %503 = vmatpush.xpose.msra.mxu0 0.0
        %504 = vmatpush.xpose.msra.mxu0 0.0
        %505 = vmatpush.xpose.msra.mxu0 0.0
        %506 = vmatpush.xpose.msra.mxu0 0.0
        %507 = vmatpush.xpose.msra.mxu0 0.0
        %508 = vmatpush.xpose.msra.mxu0 0.0
        %509 = vmatpush.xpose.msra.mxu0 0.0
        %510 = vmatpush.xpose.msra.mxu0 0.0
        %511 = vmatpush.xpose.msra.mxu0 0.0
        %512 = vmatpush.xpose.msra.mxu0 0.0
        %513 = vmatpush.xpose.msra.mxu0 0.0
        %514 = vmatpush.xpose.msra.mxu0 0.0
        %515 = vmatpush.xpose.msra.mxu0 0.0
        %516 = vmatpush.xpose.msra.mxu0 0.0
        %517 = vmatpush.xpose.msra.mxu0 %v500
        %518 = vmatmul.f32.gmra.mxu0 %v497
        %v519 = vpop.f32.mrf.mxu0
        %v520 = vadd.f32 0.0, %v519
        %521 = vdwg.mxu0
        %vm522 = vcmask 64512
        %v523 = vsel %vm522, %v442, -inf
        %524 = vmax.xlane.f32.xlu0 %v523
        %v525 = vpop.xlane.xlu0 %524
        %v526 = vsel %vm522, %v468, -inf
        %527 = vmax.xlane.f32.xlu0 %v526
        %v528 = vpop.xlane.xlu0 %527
        %v529 = vsel %vm522, %v494, -inf
        %530 = vmax.xlane.f32.xlu0 %v529
        %v531 = vpop.xlane.xlu0 %530
        %v532 = vsel %vm522, %v520, -inf
        %533 = vmax.xlane.f32.xlu0 %v532
        %v534 = vpop.xlane.xlu0 %533
        %v535 = vsub.f32 %v442, %v525
        %v536 = vsub.f32 %v468, %v528
        %v537 = vsub.f32 %v494, %v531
        %v538 = vsub.f32 %v520, %v534
        %v539 = vmul.f32 %v535, 1.442695
        %v540 = vpow.pop %v539
        %v541 = vmul.f32 %v536, 1.442695
        %v542 = vpow.pop %v541
        %v543 = vmul.f32 %v537, 1.442695
        %v544 = vpow.pop %v543
        %v545 = vmul.f32 %v538, 1.442695
        %v546 = vpow.pop %v545
        %v547 = vsel %vm522, %v540, 0.0
        %548 = vadd.xlane.f32.xlu0 %v547
        %v549 = vpop.xlane.xlu0 %548
        %v550 = vsel %vm522, %v542, 0.0
        %551 = vadd.xlane.f32.xlu0 %v550
        %v552 = vpop.xlane.xlu0 %551
        %v553 = vsel %vm522, %v544, 0.0
        %554 = vadd.xlane.f32.xlu0 %v553
        %v555 = vpop.xlane.xlu0 %554
        %v556 = vsel %vm522, %v546, 0.0
        %557 = vadd.xlane.f32.xlu0 %v556
        %v558 = vpop.xlane.xlu0 %557
        %v559 = vlog2.pop %v549
        %v560 = vmul.f32 %v559, 0.6931472
        %v561 = vlog2.pop %v552
        %v562 = vmul.f32 %v561, 0.6931472
        %v563 = vlog2.pop %v555
        %v564 = vmul.f32 %v563, 0.6931472
        %v565 = vlog2.pop %v558
        %v566 = vmul.f32 %v565, 0.6931472
        %v567 = vadd.f32 %v560, %v525
        %v568 = vadd.f32 %v562, %v528
        %v569 = vadd.f32 %v564, %v531
        %v570 = vadd.f32 %v566, %v534
        %v571 = vmul.f32 %v322, %v414
        %v572 = vmul.f32 %v323, %v415
        %v573 = vmul.f32 %v324, %v416
        %v574 = vmul.f32 %v325, %v417
        %v575 = vsel %vm237, %v571, 0.0
        %576 = vadd.xlane.f32.xlu0 %v575
        %v577 = vpop.xlane.xlu0 %576
        %v578 = vsel %vm237, %v572, 0.0
        %579 = vadd.xlane.f32.xlu0 %v578
        %v580 = vpop.xlane.xlu0 %579
        %v581 = vsel %vm237, %v573, 0.0
        %582 = vadd.xlane.f32.xlu0 %v581
        %v583 = vpop.xlane.xlu0 %582
        %v584 = vsel %vm237, %v574, 0.0
        %585 = vadd.xlane.f32.xlu0 %v584
        %v586 = vpop.xlane.xlu0 %585
        %v587 = vsub.f32 %v567, %v577
        %v588 = vsub.f32 %v568, %v580
        %v589 = vsub.f32 %v569, %v583
        %v590 = vsub.f32 %v570, %v586
        %vm591 = vcmask 7168
        %v592 = vsel %vm591, %v587, 0.0
        %v593 = vsel %vm591, %v588, 0.0
        %v594 = vadd.f32 %v592, %v593
        %v595 = vsel %vm591, %v589, 0.0
        %v596 = vadd.f32 %v594, %v595
        %v597 = vsel %vm591, %v590, 0.0
        %v598 = vadd.f32 %v596, %v597
        %599 = vadd.xlane.f32.xlu0 %v598
        %v600 = vpop.xlane.xlu0 %599
        %v601 = vrot.slane %v600, 4
        %v602 = vadd.f32 %v600, %v601
        %v603 = vrot.slane %v602, 2
        %v604 = vadd.f32 %v602, %v603
        %v605 = vrot.slane %v604, 1
        %v606 = vadd.f32 %v604, %v605
        %s607 = vtos %v606
        %v608 = vstv %s607
        %609 = vst [vmem:[%s222] sm:$0x1] %v608
        %s610 = sand.u32 %s98, 1
        %s611 = scalar_lea.sflag [#allocation4], %s610
        %s612 = sand.u32 %s98, 1
        %s613 = scalar_lea.vmem [#allocation7], %s612
        // Predicated region
        $region37: #{tpu_custom_call.1} parent=27 // pred_check
          %p614 = pneg %p108
        $region38: #{tpu_custom_call.1} parent=27 // pred_check_branch
          %616 = sbr.rel (%p614) target = $region40
        $region39: #{tpu_custom_call.1} parent=27 // pred_region
          %618 = vsyncadd %s611, 0
          %s619 = sadd.s32 %s27, %s26
          %s620 = scalar_lea.hbm %s2, %s619
          %s622 = sshll.u32 %s613, 4
          %s623 = int_to_ptr.vmem [resolvable:$true] %s622
          %s624 = sshll.u32 %s620, 4
          %s625 = int_to_ptr.hbm [resolvable:$true] %s624
          %627 = dma.vmem_to_hbm [thread:$0]  %s623, 16, %s625, %s611
        $region40: #{tpu_custom_call.1} parent=27 // pred_fallthru
          _
      $region28: #{tpu_custom_call.1} parent=5 // pred_fallthru
        _
      %p628 = scmp.le.s32.totalorder 2, %s17
      // Predicated region
      $region41: #{tpu_custom_call.1} parent=5 // pred_check
        %p629 = pneg %p628
      $region42: #{tpu_custom_call.1} parent=5 // pred_check_branch
        %631 = sbr.rel (%p629) target = $region44
      $region43: #{tpu_custom_call.1} parent=5 // pred_region
        %s632 = ssub.s32 %s17, 2
        // Predicated region
        $region45: #{tpu_custom_call.1} parent=43 // pred_check
          %p633 = pneg %p114
        $region46: #{tpu_custom_call.1} parent=43 // pred_check_branch
          %635 = sbr.rel (%p633) target = $region48
        $region47: #{tpu_custom_call.1} parent=43 // pred_region
          %s636 = sand.u32 %s99, 1
          %s637 = scalar_lea.sflag [#allocation4], %s636
          %s638 = sand.u32 %s99, 1
          %s639 = scalar_lea.vmem [#allocation7], %s638
          %641 = dma.done %s637, 16
        $region48: #{tpu_custom_call.1} parent=43 // pred_fallthru
          _
      $region44: #{tpu_custom_call.1} parent=5 // pred_fallthru
        _
    $region6: #{tpu_custom_call.1} parent=1 // loop_footer
      %s21 = sadd.s32 1, %s17
    $region7: #{tpu_custom_call.1} parent=1 // loop_footer_branch
      %16 = sbr.rel target = $region3
    $region8: #{tpu_custom_call.1} parent=1 // loop_exit
      _
    %642 = vsyncpa [#allocation3], 1
    %s643 = scalar_lea.sflag [#allocation3], 1
    %644 = vsyncpa %s643, 1
    %645 = vsyncpa [#allocation6], 1
    %s646 = scalar_lea.sflag [#allocation6], 1
    %647 = vsyncpa %s646, 1
    %648 = vsyncpa [#allocation4], 1
    %s649 = scalar_lea.sflag [#allocation4], 1
    %650 = vsyncpa %s649, 1

</llo_original>
